<compile_context>
chip_gen: v7x
topology: tpu7x:2x2x1
jax: 0.10.0
libtpu: 0.0.40
codegen_flags: <defaults>
</compile_context>

<pallas_src>
import jax
import jax.numpy as jnp
from jax.experimental import pallas as pl
from jax.experimental.pallas import tpu as pltpu


# ----------------------------------------------------------------------------
# Fused Pallas kernel: Encoder MLP -> GCNConv -> fused pair gather -> loss
# ----------------------------------------------------------------------------
def _elu(x):
    """nn.ELU(alpha=1): x if x>0 else exp(x)-1.  The negative branch is
    computed on the clamped argument so the discarded branch never overflows;
    exp lowers to the (otherwise idle) EUP slot, no VALU divide."""
    return jnp.where(x > 0.0, x, jnp.exp(jnp.minimum(x, 0.0)) - 1.0)


def task1_fused_kernel(idx_ref, x0_ref, a_ref, w_ref, b_ref, emb_ref, loss_ref):
    # ---- Encoder: Linear -> ELU -> Linear -> ELU -> Linear (all MXU) --------
    # w_ref: (4, 32, 32) stacked [w1, w2, w3, wg]; leading-axis index is free.
    # b_ref: (4, 1, 32) stacked [b1, b2, b3, bg].
    h = jnp.dot(x0_ref[...], w_ref[0], preferred_element_type=jnp.float32) + b_ref[0]
    h = _elu(h)
    h = jnp.dot(h, w_ref[1], preferred_element_type=jnp.float32) + b_ref[1]
    h = _elu(h)
    h = jnp.dot(h, w_ref[2], preferred_element_type=jnp.float32) + b_ref[2]

    # ---- GCNConv: emb = A_norm @ (H @ Wg) + bg ------------------------------
    hw = jnp.dot(h, w_ref[3], preferred_element_type=jnp.float32)
    emb = jnp.dot(a_ref[...], hw, preferred_element_type=jnp.float32) + b_ref[3]
    emb_ref[...] = emb

    # ---- Fused in-kernel pair gather: one (2B,N) one-hot @ emb (single MXU) -
    two_b = idx_ref.shape[0]          # 2B (x indices stacked over y indices)
    bsz = two_b // 2
    n = emb.shape[0]
    col = jax.lax.broadcasted_iota(jnp.int32, (two_b, n), 1)
    sel = (col == idx_ref[...]).astype(jnp.float32)                  # (2B, N)
    xy = jnp.dot(sel, emb, preferred_element_type=jnp.float32)       # (2B, D)

    # ---- loss = mean_i || normalize(x_i) - normalize(y_i) ||_2^2 ------------
    eps = 1e-12  # F.normalize default
    xyn = xy * jax.lax.rsqrt(
        jnp.maximum(jnp.sum(xy * xy, axis=-1, keepdims=True), eps * eps))
    d = xyn[:bsz] - xyn[bsz:]                                        # (B, D)
    total = jnp.sum(d * d)                                           # scalar
    loss_ref[0, 0] = total * (1.0 / bsz)                             # -> SMEM


# ----------------------------------------------------------------------------
# Wrapper: one fused pallas_call per forward (grid=() on purpose)
# ----------------------------------------------------------------------------
def task1_forward(inputs, a_norm, x0, w_stack, b_stack):
    n = x0.shape[0]
    d = w_stack.shape[2]
    b = inputs.shape[0]
    # Stack x-indices over y-indices so the gather is a single matmul.
    idx = jnp.concatenate([inputs[:, 0], inputs[:, 1]], axis=0)
    idx = idx.astype(jnp.int32).reshape(2 * b, 1)                    # (2B, 1)

    vmem = pl.BlockSpec(memory_space=pltpu.MemorySpace.VMEM)
    smem = pl.BlockSpec(memory_space=pltpu.MemorySpace.SMEM)

    emb, loss = pl.pallas_call(
        task1_fused_kernel,
        out_shape=(jax.ShapeDtypeStruct((n, d), jnp.float32),
                   jax.ShapeDtypeStruct((1, 1), jnp.float32)),
        in_specs=[vmem] * 5,
        out_specs=(vmem, smem),
        cost_estimate=pl.CostEstimate(
            flops=400_000, transcendentals=2_200, bytes_accessed=32_000),
    )(idx, x0, a_norm, w_stack, b_stack)
    return loss[0, 0], emb


task1_forward_jit = jax.jit(task1_forward)


def build_normalized_adjacency(edge_index, num_nodes):
    """Dense D^{-1/2}(A+I)D^{-1/2}, with A[dst, src] += 1 per edge (PyG
    source->target flow).  Built ONCE for the static graph with one-hot
    matmuls (MXU) instead of a serialized TPU scatter."""
    src_oh = jax.nn.one_hot(edge_index[0], num_nodes, dtype=jnp.float32)   # (E, N)
    dst_oh = jax.nn.one_hot(edge_index[1], num_nodes, dtype=jnp.float32)   # (E, N)
    a = dst_oh.T @ src_oh + jnp.eye(num_nodes, dtype=jnp.float32)
    d_inv = jax.lax.rsqrt(jnp.maximum(jnp.sum(a, axis=1), 1e-12))
    return d_inv[:, None] * a * d_inv[None, :]


# ----------------------------------------------------------------------------
# Main
# ----------------------------------------------------------------------------
if __name__ == "__main__":
    key = jax.random.PRNGKey(0)
    n_items, n_attrs = 16, 16
    in_dim, embed_dim = 32, 32
    num_nodes = n_items + n_attrs
    num_edges = 48
    batch = 8

    keys = jax.random.split(key, 10)

    # deterministic "pretrained" init embeddings
    item_emb = jax.random.normal(keys[0], (n_items, in_dim), jnp.float32)
    attr_emb = jax.random.normal(keys[1], (n_attrs, in_dim), jnp.float32)

    def xavier_uniform(k, fan_in, fan_out):
        lim = (6.0 / (fan_in + fan_out)) ** 0.5
        return jax.random.uniform(k, (fan_in, fan_out), jnp.float32, -lim, lim)

    # Encoder params (weights as (in, out); bias filled with 0.01 as in init_weights)
    w1 = xavier_uniform(keys[2], in_dim, in_dim)
    b1 = jnp.full((1, in_dim), 0.01, jnp.float32)
    w2 = xavier_uniform(keys[3], in_dim, in_dim)
    b2 = jnp.full((1, in_dim), 0.01, jnp.float32)
    w3 = xavier_uniform(keys[4], in_dim, embed_dim)
    b3 = jnp.full((1, embed_dim), 0.01, jnp.float32)

    # GCNConv params
    wg = xavier_uniform(keys[5], embed_dim, embed_dim)
    bg = jnp.zeros((1, embed_dim), jnp.float32)

    # synthetic graph + training pairs
    src = jax.random.randint(keys[6], (num_edges,), 0, num_nodes, jnp.int32)
    dst = jax.random.randint(keys[7], (num_edges,), 0, num_nodes, jnp.int32)
    edge_index = jnp.stack([src, dst], axis=0)                  # (2, E)
    inputs = jax.random.randint(keys[8], (batch, 2), 0, num_nodes, jnp.int32)

    # Static per-graph / per-model prep, hoisted OUT of the forward path.
    a_norm = build_normalized_adjacency(edge_index, num_nodes)  # (N, N)
    x0 = jnp.concatenate([item_emb, attr_emb], axis=0)          # (N, in_dim)

    # Packed parameters: 4 weights -> one (4,32,32); 4 biases -> one (4,1,32).
    w_stack = jnp.stack([w1, w2, w3, wg], axis=0)
    b_stack = jnp.stack([b1, b2, b3, bg], axis=0)

    loss, embeddings = task1_forward_jit(inputs, a_norm, x0, w_stack, b_stack)
    jax.block_until_ready((loss, embeddings))

    assert embeddings.shape == (num_nodes, embed_dim)
    assert loss.shape == ()
    print("KERNEL_OK")
</pallas_src>

<mosaic_0001>
module attributes {stable_mosaic.version = 11 : i64} {
  func.func @task1_fused_kernel(%arg0: memref<16x1xi32, #tpu.memory_space<vmem>>, %arg1: memref<32x32xf32, #tpu.memory_space<vmem>>, %arg2: memref<32x32xf32, #tpu.memory_space<vmem>>, %arg3: memref<4x32x32xf32, #tpu.memory_space<vmem>>, %arg4: memref<4x1x32xf32, #tpu.memory_space<vmem>>, %arg5: memref<32x32xf32, #tpu.memory_space<vmem>>, %arg6: memref<1x1xf32, #tpu.memory_space<smem>>) attributes {dimension_semantics = [], scalar_prefetch = 0 : i64, scratch_operands = 0 : i64, tpu.core_type = #tpu.core_type<tc>} {
    %c0 = arith.constant 0 : index
    %c0_0 = arith.constant 0 : index
    %0 = vector.load %arg1[%c0, %c0_0] : memref<32x32xf32, #tpu.memory_space<vmem>>, vector<32x32xf32>
    %c0_1 = arith.constant 0 : index
    %c0_2 = arith.constant 0 : index
    %c0_3 = arith.constant 0 : index
    %1 = vector.load %arg3[%c0_1, %c0_2, %c0_3] : memref<4x32x32xf32, #tpu.memory_space<vmem>>, vector<1x32x32xf32>
    %2 = vector.shape_cast %1 : vector<1x32x32xf32> to vector<32x32xf32>
    %cst = arith.constant dense<0.000000e+00> : vector<32x32xf32>
    %3 = tpu.matmul %0, %2, %cst {dimension_numbers = #tpu.dot_dimension_numbers<[1], [0], [0], [1], [0, 0, 1, 1], [], []>} : vector<32x32xf32>, vector<32x32xf32>, vector<32x32xf32> -> vector<32x32xf32>
    %c0_4 = arith.constant 0 : index
    %c0_5 = arith.constant 0 : index
    %c0_6 = arith.constant 0 : index
    %4 = vector.load %arg4[%c0_4, %c0_5, %c0_6] : memref<4x1x32xf32, #tpu.memory_space<vmem>>, vector<1x1x32xf32>
    %5 = vector.shape_cast %4 : vector<1x1x32xf32> to vector<1x32xf32>
    %6 = vector.broadcast %5 : vector<1x32xf32> to vector<32x32xf32>
    %7 = arith.addf %3, %6 : vector<32x32xf32>
    %cst_7 = arith.constant 0.000000e+00 : f32
    %8 = vector.broadcast %cst_7 : f32 to vector<32x32xf32>
    %9 = arith.cmpf ogt, %7, %8 : vector<32x32xf32>
    %cst_8 = arith.constant 0.000000e+00 : f32
    %10 = vector.broadcast %cst_8 : f32 to vector<32x32xf32>
    %11 = arith.minimumf %7, %10 : vector<32x32xf32>
    %12 = math.exp %11 : vector<32x32xf32>
    %cst_9 = arith.constant 1.000000e+00 : f32
    %13 = vector.broadcast %cst_9 : f32 to vector<32x32xf32>
    %14 = arith.subf %12, %13 : vector<32x32xf32>
    %15 = arith.select %9, %7, %14 : vector<32x32xi1>, vector<32x32xf32>
    %c1 = arith.constant 1 : index
    %c0_10 = arith.constant 0 : index
    %c0_11 = arith.constant 0 : index
    %16 = vector.load %arg3[%c1, %c0_10, %c0_11] : memref<4x32x32xf32, #tpu.memory_space<vmem>>, vector<1x32x32xf32>
    %17 = vector.shape_cast %16 : vector<1x32x32xf32> to vector<32x32xf32>
    %cst_12 = arith.constant dense<0.000000e+00> : vector<32x32xf32>
    %18 = tpu.matmul %15, %17, %cst_12 {dimension_numbers = #tpu.dot_dimension_numbers<[1], [0], [0], [1], [0, 0, 1, 1], [], []>} : vector<32x32xf32>, vector<32x32xf32>, vector<32x32xf32> -> vector<32x32xf32>
    %c1_13 = arith.constant 1 : index
    %c0_14 = arith.constant 0 : index
    %c0_15 = arith.constant 0 : index
    %19 = vector.load %arg4[%c1_13, %c0_14, %c0_15] : memref<4x1x32xf32, #tpu.memory_space<vmem>>, vector<1x1x32xf32>
    %20 = vector.shape_cast %19 : vector<1x1x32xf32> to vector<1x32xf32>
    %21 = vector.broadcast %20 : vector<1x32xf32> to vector<32x32xf32>
    %22 = arith.addf %18, %21 : vector<32x32xf32>
    %cst_16 = arith.constant 0.000000e+00 : f32
    %23 = vector.broadcast %cst_16 : f32 to vector<32x32xf32>
    %24 = arith.cmpf ogt, %22, %23 : vector<32x32xf32>
    %cst_17 = arith.constant 0.000000e+00 : f32
    %25 = vector.broadcast %cst_17 : f32 to vector<32x32xf32>
    %26 = arith.minimumf %22, %25 : vector<32x32xf32>
    %27 = math.exp %26 : vector<32x32xf32>
    %cst_18 = arith.constant 1.000000e+00 : f32
    %28 = vector.broadcast %cst_18 : f32 to vector<32x32xf32>
    %29 = arith.subf %27, %28 : vector<32x32xf32>
    %30 = arith.select %24, %22, %29 : vector<32x32xi1>, vector<32x32xf32>
    %c2 = arith.constant 2 : index
    %c0_19 = arith.constant 0 : index
    %c0_20 = arith.constant 0 : index
    %31 = vector.load %arg3[%c2, %c0_19, %c0_20] : memref<4x32x32xf32, #tpu.memory_space<vmem>>, vector<1x32x32xf32>
    %32 = vector.shape_cast %31 : vector<1x32x32xf32> to vector<32x32xf32>
    %cst_21 = arith.constant dense<0.000000e+00> : vector<32x32xf32>
    %33 = tpu.matmul %30, %32, %cst_21 {dimension_numbers = #tpu.dot_dimension_numbers<[1], [0], [0], [1], [0, 0, 1, 1], [], []>} : vector<32x32xf32>, vector<32x32xf32>, vector<32x32xf32> -> vector<32x32xf32>
    %c2_22 = arith.constant 2 : index
    %c0_23 = arith.constant 0 : index
    %c0_24 = arith.constant 0 : index
    %34 = vector.load %arg4[%c2_22, %c0_23, %c0_24] : memref<4x1x32xf32, #tpu.memory_space<vmem>>, vector<1x1x32xf32>
    %35 = vector.shape_cast %34 : vector<1x1x32xf32> to vector<1x32xf32>
    %36 = vector.broadcast %35 : vector<1x32xf32> to vector<32x32xf32>
    %37 = arith.addf %33, %36 : vector<32x32xf32>
    %c3 = arith.constant 3 : index
    %c0_25 = arith.constant 0 : index
    %c0_26 = arith.constant 0 : index
    %38 = vector.load %arg3[%c3, %c0_25, %c0_26] : memref<4x32x32xf32, #tpu.memory_space<vmem>>, vector<1x32x32xf32>
    %39 = vector.shape_cast %38 : vector<1x32x32xf32> to vector<32x32xf32>
    %cst_27 = arith.constant dense<0.000000e+00> : vector<32x32xf32>
    %40 = tpu.matmul %37, %39, %cst_27 {dimension_numbers = #tpu.dot_dimension_numbers<[1], [0], [0], [1], [0, 0, 1, 1], [], []>} : vector<32x32xf32>, vector<32x32xf32>, vector<32x32xf32> -> vector<32x32xf32>
    %c0_28 = arith.constant 0 : index
    %c0_29 = arith.constant 0 : index
    %41 = vector.load %arg2[%c0_28, %c0_29] : memref<32x32xf32, #tpu.memory_space<vmem>>, vector<32x32xf32>
    %cst_30 = arith.constant dense<0.000000e+00> : vector<32x32xf32>
    %42 = tpu.matmul %41, %40, %cst_30 {dimension_numbers = #tpu.dot_dimension_numbers<[1], [0], [0], [1], [0, 0, 1, 1], [], []>} : vector<32x32xf32>, vector<32x32xf32>, vector<32x32xf32> -> vector<32x32xf32>
    %c3_31 = arith.constant 3 : index
    %c0_32 = arith.constant 0 : index
    %c0_33 = arith.constant 0 : index
    %43 = vector.load %arg4[%c3_31, %c0_32, %c0_33] : memref<4x1x32xf32, #tpu.memory_space<vmem>>, vector<1x1x32xf32>
    %44 = vector.shape_cast %43 : vector<1x1x32xf32> to vector<1x32xf32>
    %45 = vector.broadcast %44 : vector<1x32xf32> to vector<32x32xf32>
    %46 = arith.addf %42, %45 : vector<32x32xf32>
    %c0_34 = arith.constant 0 : index
    %c0_35 = arith.constant 0 : index
    %47 = vector.load %arg5[%c0_34, %c0_35] : memref<32x32xf32, #tpu.memory_space<vmem>>, vector<32x32xf32>
    tpu.vector_store %arg5[%c0_34, %c0_35], %46 {strides = array<i32>} : memref<32x32xf32, #tpu.memory_space<vmem>>, vector<32x32xf32>,
    %48 = tpu.iota {dimensions = array<i32: 1>} : vector<16x32xi32>
    %c0_36 = arith.constant 0 : index
    %c0_37 = arith.constant 0 : index
    %49 = vector.load %arg0[%c0_36, %c0_37] : memref<16x1xi32, #tpu.memory_space<vmem>>, vector<16x1xi32>
    %50 = vector.broadcast %49 : vector<16x1xi32> to vector<16x32xi32>
    %51 = arith.cmpi eq, %48, %50 : vector<16x32xi32>
    %52 = arith.extui %51 : vector<16x32xi1> to vector<16x32xi32>
    %53 = arith.sitofp %52 : vector<16x32xi32> to vector<16x32xf32>
    %cst_38 = arith.constant dense<0.000000e+00> : vector<16x32xf32>
    %54 = tpu.matmul %53, %46, %cst_38 {dimension_numbers = #tpu.dot_dimension_numbers<[1], [0], [0], [1], [0, 0, 1, 1], [], []>} : vector<16x32xf32>, vector<32x32xf32>, vector<16x32xf32> -> vector<16x32xf32>
    %55 = arith.mulf %54, %54 : vector<16x32xf32>
    %cst_39 = arith.constant dense<0.000000e+00> : vector<16xf32>
    %56 = vector.multi_reduction <add>, %55, %cst_39 [1] : vector<16x32xf32> to vector<16xf32>
    %57 = vector.shape_cast %56 : vector<16xf32> to vector<16x1xf32>
    %cst_40 = arith.constant 1.000000e-24 : f32
    %58 = vector.broadcast %cst_40 : f32 to vector<16x1xf32>
    %59 = arith.maximumf %57, %58 : vector<16x1xf32>
    %60 = math.rsqrt %59 : vector<16x1xf32>
    %61 = vector.broadcast %60 : vector<16x1xf32> to vector<16x32xf32>
    %62 = arith.mulf %54, %61 : vector<16x32xf32>
    %63 = vector.extract_strided_slice %62 {offsets = [0, 0], sizes = [8, 32], strides = [1, 1]} : vector<16x32xf32> to vector<8x32xf32>
    %64 = vector.extract_strided_slice %62 {offsets = [8, 0], sizes = [8, 32], strides = [1, 1]} : vector<16x32xf32> to vector<8x32xf32>
    %65 = arith.subf %63, %64 : vector<8x32xf32>
    %66 = arith.mulf %65, %65 : vector<8x32xf32>
    %67 = vector.shape_cast %66 : vector<8x32xf32> to vector<1x8x32xf32>
    %cst_41 = arith.constant dense<0.000000e+00> : vector<1xf32>
    %68 = vector.multi_reduction <add>, %67, %cst_41 [1, 2] : vector<1x8x32xf32> to vector<1xf32>
    %69 = vector.shape_cast %68 : vector<1xf32> to vector<1x1x1xf32>
    %70 = vector.extract %69[0, 0, 0] : f32 from vector<1x1x1xf32>
    %cst_42 = arith.constant 1.250000e-01 : f32
    %71 = arith.mulf %70, %cst_42 : f32
    %c0_43 = arith.constant 0 : index
    %c0_44 = arith.constant 0 : index
    %72 = memref.load %arg6[%c0_43, %c0_44] : memref<1x1xf32, #tpu.memory_space<smem>>
    memref.store %71, %arg6[%c0_43, %c0_44] : memref<1x1xf32, #tpu.memory_space<smem>>
    return
  }
}

</mosaic_0001>

<llo_original>
// kernel: task1_forward.1
$region0: #{task1_forward.1}
  #allocation0 [shape = 'u32[]', space=smem, size = 0x4, offset = 0x4, fixed_abs, tag = 'smem constant byte address 0x4 - core index']
  #allocation1 [shape = 'u32[144,128]{1,0:T(1,128)}', space=vmem, size = 0x12000, scoped, tag = 'internal scratch']
  %s0 = inlined_call_operand.vmem [shape: s32[16,1], index: 0, kind: input, shape index: {}]
  %s1 = inlined_call_operand.vmem [shape: f32[32,32], index: 1, kind: input, shape index: {}]
  %s2 = inlined_call_operand.hbm [shape: f32[32,32], index: 2, kind: input, shape index: {}]
  %s3 = inlined_call_operand.hbm [shape: f32[4,32,32], index: 3, kind: input, shape index: {}]
  %s4 = inlined_call_operand.vmem [shape: f32[4,1,32], index: 4, kind: input, shape index: {}]
  %s5 = inlined_call_operand.hbm [shape: f32[32,32], index: 5, kind: output, shape index: {0}]
  %s6 = inlined_call_operand.hbm [shape: f32[1,1], index: 6, kind: output, shape index: {1}]
  %7 = xla_tuple %s5, %s6
  %s8 = sld [smem:[#allocation0]]
  $region46: #{task1_forward.1} parent=0
    _
  %s10 = ssub.s32 1, %s8
  %s11 = scalar_select 0, %s10, %s8
  $region1: #{task1_forward.1} parent=0
    #allocation2 [shape = 'u8[16384]{0}', space=vmem, size = 0x4000, scoped, tag = 'input window, operand 2, single buffered']
    #allocation3 [shape = 's32[1]{0}', space=sflag, size = 0x4, scoped, tag = 'scoped memory for task1_forward.1']
    #allocation4 [shape = 's32[1]{0}', space=sflag, size = 0x4, scoped, tag = 'scoped memory for task1_forward.1']
    #allocation5 [shape = 's32[1]{0}', space=sflag, size = 0x4, scoped, tag = 'scoped memory for task1_forward.1']
    #allocation6 [shape = 'u8[65536]{0}', space=vmem, size = 0x10000, scoped, tag = 'input window, operand 3, single buffered']
    #allocation7 [shape = 's32[1]{0}', space=sflag, size = 0x4, scoped, tag = 'scoped memory for task1_forward.1']
    #allocation8 [shape = 'u8[16384]{0}', space=vmem, size = 0x4000, scoped, tag = 'output window, operand 0, single buffered']
    #allocation9 [shape = 'u8[512]{0}', space=smem, size = 0x200, scoped, tag = 'output window, operand 1, single buffered']
    %12 = vsyncpa [#allocation3], 0
    %13 = vsyncpa [#allocation7], 0
    %14 = vsyncpa [#allocation4], 0
    %15 = vsyncpa [#allocation5], 0
    // Predicated region
    $region2: #{task1_forward.1} parent=1 // pred_check
      _
    $region3: #{task1_forward.1} parent=1 // pred_check_branch
      %17 = sbr.rel (0) target = $region5
    $region4: #{task1_forward.1} parent=1 // pred_region
      _
    $region5: #{task1_forward.1} parent=1 // pred_fallthru
      _
    // Predicated region
    $region6: #{task1_forward.1} parent=1 // pred_check
      _
    $region7: #{task1_forward.1} parent=1 // pred_check_branch
      %19 = sbr.rel (0) target = $region9
    $region8: #{task1_forward.1} parent=1 // pred_region
      _
    $region9: #{task1_forward.1} parent=1 // pred_fallthru
      _
    // Predicated region
    $region10: #{task1_forward.1} parent=1 // pred_check
      _
    $region11: #{task1_forward.1} parent=1 // pred_check_branch
      %21 = sbr.rel (0) target = $region13
    $region12: #{task1_forward.1} parent=1 // pred_region
      %s23 = ssub.s32 512, 512
      %24 = vsyncadd [#allocation3], %s23
      %s25 = sshll.u32 [#allocation2], 4
      %s26 = int_to_ptr.vmem [resolvable:$true] %s25
      %31 = dma.hbm_to_vmem [thread:$0]  %s2, 512, %s26, [#allocation3], 128, 128, 8
    $region13: #{task1_forward.1} parent=1 // pred_fallthru
      _
    // Predicated region
    $region14: #{task1_forward.1} parent=1 // pred_check
      _
    $region15: #{task1_forward.1} parent=1 // pred_check_branch
      %33 = sbr.rel (0) target = $region17
    $region16: #{task1_forward.1} parent=1 // pred_region
      %s35 = ssub.s32 2048, 2048
      %36 = vsyncadd [#allocation7], %s35
      %s37 = sshll.u32 [#allocation6], 4
      %s38 = int_to_ptr.vmem [resolvable:$true] %s37
      %43 = dma.hbm_to_vmem [thread:$0]  %s3, 2048, %s38, [#allocation7], 128, 128, 8
    $region17: #{task1_forward.1} parent=1 // pred_fallthru
      _
    // Predicated region
    $region18: #{task1_forward.1} parent=1 // pred_check
      _
    $region19: #{task1_forward.1} parent=1 // pred_check_branch
      %45 = sbr.rel (0) target = $region21
    $region20: #{task1_forward.1} parent=1 // pred_region
      _
    $region21: #{task1_forward.1} parent=1 // pred_fallthru
      _
    // Predicated region
    $region22: #{task1_forward.1} parent=1 // pred_check
      _
    $region23: #{task1_forward.1} parent=1 // pred_check_branch
      %47 = sbr.rel (0) target = $region25
    $region24: #{task1_forward.1} parent=1 // pred_region
      %48 = dma.done [#allocation3], 512
    $region25: #{task1_forward.1} parent=1 // pred_fallthru
      _
    // Predicated region
    $region26: #{task1_forward.1} parent=1 // pred_check
      _
    $region27: #{task1_forward.1} parent=1 // pred_check_branch
      %50 = sbr.rel (0) target = $region29
    $region28: #{task1_forward.1} parent=1 // pred_region
      %51 = dma.done [#allocation7], 2048
    $region29: #{task1_forward.1} parent=1 // pred_fallthru
      _
    %v52 = vld [vmem:[%s1] sm:$0xff]
    %v53 = vld [vmem:[%s1 + $0x8] sm:$0xff]
    %v54 = vld [vmem:[%s1 + $0x10] sm:$0xff]
    %v55 = vld [vmem:[%s1 + $0x18] sm:$0xff]
    %v56 = vld [vmem:[#allocation6] sm:$0xff]
    %v57 = vld [vmem:[#allocation6 + $0x8] sm:$0xff]
    %v58 = vld [vmem:[#allocation6 + $0x10] sm:$0xff]
    %v59 = vld [vmem:[#allocation6 + $0x18] sm:$0xff]
    %v60 = vld [vmem:[%s4] sm:$0x1]
    %v62 = vlaneseq
    %v63 = vshrl.u32 %v62, 7
    %v64 = vsub.s32 0, %v63
    %v65 = vrot.slane %v60, %v64
    %vm67 = vcmask 261120
    %v69 = vsel %vm67, %v52, 0
    %v72 = vsel %vm67, %v53, 0
    %v75 = vsel %vm67, %v54, 0
    %v78 = vsel %vm67, %v55, 0
    %80 = vmatprep.subr.mxu0 0.0
    %81 = vmatpush1.msra.mxu0 %v56
    %82 = vmatprep.subr.mxu0 0.0
    %83 = vmatpush1.msra.mxu0 %v57
    %84 = vmatprep.subr.mxu0 0.0
    %85 = vmatpush1.msra.mxu0 %v58
    %86 = vmatprep.subr.mxu0 0.0
    %87 = vmatpush1.msra.mxu0 %v59
    %88 = vmatprep.subr.mxu0 0.0
    %89 = vmatpush1.msra.mxu0 0.0
    %90 = vmatprep.subr.mxu0 0.0
    %91 = vmatpush1.msra.mxu0 0.0
    %92 = vmatprep.subr.mxu0 0.0
    %93 = vmatpush1.msra.mxu0 0.0
    %94 = vmatprep.subr.mxu0 0.0
    %95 = vmatpush1.msra.mxu0 0.0
    %96 = vmatprep.subr.mxu0 0.0
    %97 = vmatpush1.msra.mxu0 0.0
    %98 = vmatprep.subr.mxu0 0.0
    %99 = vmatpush1.msra.mxu0 0.0
    %100 = vmatprep.subr.mxu0 0.0
    %101 = vmatpush1.msra.mxu0 0.0
    %102 = vmatprep.subr.mxu0 0.0
    %103 = vmatpush1.msra.mxu0 0.0
    %104 = vmatprep.subr.mxu0 0.0
    %105 = vmatpush1.msra.mxu0 0.0
    %106 = vmatprep.subr.mxu0 0.0
    %107 = vmatpush1.msra.mxu0 0.0
    %108 = vmatprep.subr.mxu0 0.0
    %109 = vmatpush1.msra.mxu0 0.0
    %110 = vmatprep.subr.mxu0 0.0
    %111 = vmatpush1.msra.mxu0 0.0
    %112 = vmatprep.subr.mxu0 0.0
    %113 = vmatpush1.msra.mxu0 0.0
    %114 = vmatprep.subr.mxu0 0.0
    %115 = vmatpush1.msra.mxu0 0.0
    %116 = vmatprep.subr.mxu0 0.0
    %117 = vmatpush1.msra.mxu0 0.0
    %118 = vmatprep.subr.mxu0 0.0
    %119 = vmatpush1.msra.mxu0 0.0
    %120 = vmatprep.subr.mxu0 0.0
    %121 = vmatpush1.msra.mxu0 0.0
    %122 = vmatprep.subr.mxu0 0.0
    %123 = vmatpush1.msra.mxu0 0.0
    %124 = vmatprep.subr.mxu0 0.0
    %125 = vmatpush1.msra.mxu0 0.0
    %126 = vmatprep.subr.mxu0 0.0
    %127 = vmatpush1.msra.mxu0 0.0
    %128 = vmatprep.subr.mxu0 0.0
    %129 = vmatpush1.msra.mxu0 0.0
    %130 = vmatprep.subr.mxu0 0.0
    %131 = vmatpush1.msra.mxu0 0.0
    %132 = vmatprep.subr.mxu0 0.0
    %133 = vmatpush1.msra.mxu0 0.0
    %134 = vmatprep.subr.mxu0 0.0
    %135 = vmatpush1.msra.mxu0 0.0
    %136 = vmatprep.subr.mxu0 0.0
    %137 = vmatpush1.msra.mxu0 0.0
    %138 = vmatprep.subr.mxu0 0.0
    %139 = vmatpush1.msra.mxu0 0.0
    %140 = vmatprep.subr.mxu0 0.0
    %141 = vmatpush1.msra.mxu0 0.0
    %142 = vmatprep.subr.mxu0 0.0
    %143 = vmatpush1.msra.mxu0 0.0
    %144 = vmatprep.mubr.f32.mxu0 0.0
    %145 = vmatmul.mubr.f32.gmra.mrb[0].mxu0 %v69
    %v146 = vpop.f32.mrb[0].mxu0
    %v147 = vadd.f32 %v65, %v146
    %v148 = vpop.f32.mrb[0].mxu0
    %149 = vmatprep.mubr.f32.mxu0 0.0
    %150 = vmatmul.mubr.f32.gmra.mrb[0].mxu0 %v72
    %v151 = vpop.f32.mrb[0].mxu0
    %v152 = vadd.f32 %v65, %v151
    %v153 = vpop.f32.mrb[0].mxu0
    %154 = vmatprep.mubr.f32.mxu0 0.0
    %155 = vmatmul.mubr.f32.gmra.mrb[0].mxu0 %v75
    %v156 = vpop.f32.mrb[0].mxu0
    %v157 = vadd.f32 %v65, %v156
    %v158 = vpop.f32.mrb[0].mxu0
    %159 = vmatprep.mubr.f32.mxu0 0.0
    %160 = vmatmul.mubr.f32.gmra.mrb[0].mxu0 %v78
    %v161 = vpop.f32.mrb[0].mxu0
    %v162 = vadd.f32 %v65, %v161
    %v163 = vpop.f32.mrb[0].mxu0
    %164 = vdwg.mxu0
    %vm165 = vcmp.gt.f32.partialorder %v147, 0.0
    %vm166 = vcmp.gt.f32.partialorder %v152, 0.0
    %vm167 = vcmp.gt.f32.partialorder %v157, 0.0
    %vm168 = vcmp.gt.f32.partialorder %v162, 0.0
    %v169 = vmin.f32 %v147, 0.0
    %v170 = vmin.f32 %v152, 0.0
    %v171 = vmin.f32 %v157, 0.0
    %v172 = vmin.f32 %v162, 0.0
    %v173 = vmul.f32 %v169, 1.442695
    %v174 = vpow.pop %v173
    %v175 = vmul.f32 %v170, 1.442695
    %v176 = vpow.pop %v175
    %v177 = vmul.f32 %v171, 1.442695
    %v178 = vpow.pop %v177
    %v179 = vmul.f32 %v172, 1.442695
    %v180 = vpow.pop %v179
    %v181 = vsub.f32 %v174, 1.0
    %v182 = vsub.f32 %v176, 1.0
    %v183 = vsub.f32 %v178, 1.0
    %v184 = vsub.f32 %v180, 1.0
    %v185 = vsel %vm165, %v147, %v181
    %v186 = vsel %vm166, %v152, %v182
    %v187 = vsel %vm167, %v157, %v183
    %v188 = vsel %vm168, %v162, %v184
    %s189 = scalar_lea.vmem [#allocation6], 32
    %v190 = vld [vmem:[%s189] sm:$0xff]
    %v191 = vld [vmem:[%s189 + $0x8] sm:$0xff]
    %v192 = vld [vmem:[%s189 + $0x10] sm:$0xff]
    %v193 = vld [vmem:[%s189 + $0x18] sm:$0xff]
    %s194 = scalar_lea.vmem %s4, 1
    %v195 = vld [vmem:[%s194] sm:$0x1]
    %v197 = vlaneseq
    %v198 = vshrl.u32 %v197, 7
    %v199 = vsub.s32 0, %v198
    %v200 = vrot.slane %v195, %v199
    %v203 = vsel %vm67, %v185, 0
    %v206 = vsel %vm67, %v186, 0
    %v209 = vsel %vm67, %v187, 0
    %v212 = vsel %vm67, %v188, 0
    %214 = vmatprep.subr.mxu0 0.0
    %215 = vmatpush1.msra.mxu0 %v190
    %216 = vmatprep.subr.mxu0 0.0
    %217 = vmatpush1.msra.mxu0 %v191
    %218 = vmatprep.subr.mxu0 0.0
    %219 = vmatpush1.msra.mxu0 %v192
    %220 = vmatprep.subr.mxu0 0.0
    %221 = vmatpush1.msra.mxu0 %v193
    %222 = vmatprep.subr.mxu0 0.0
    %223 = vmatpush1.msra.mxu0 0.0
    %224 = vmatprep.subr.mxu0 0.0
    %225 = vmatpush1.msra.mxu0 0.0
    %226 = vmatprep.subr.mxu0 0.0
    %227 = vmatpush1.msra.mxu0 0.0
    %228 = vmatprep.subr.mxu0 0.0
    %229 = vmatpush1.msra.mxu0 0.0
    %230 = vmatprep.subr.mxu0 0.0
    %231 = vmatpush1.msra.mxu0 0.0
    %232 = vmatprep.subr.mxu0 0.0
    %233 = vmatpush1.msra.mxu0 0.0
    %234 = vmatprep.subr.mxu0 0.0
    %235 = vmatpush1.msra.mxu0 0.0
    %236 = vmatprep.subr.mxu0 0.0
    %237 = vmatpush1.msra.mxu0 0.0
    %238 = vmatprep.subr.mxu0 0.0
    %239 = vmatpush1.msra.mxu0 0.0
    %240 = vmatprep.subr.mxu0 0.0
    %241 = vmatpush1.msra.mxu0 0.0
    %242 = vmatprep.subr.mxu0 0.0
    %243 = vmatpush1.msra.mxu0 0.0
    %244 = vmatprep.subr.mxu0 0.0
    %245 = vmatpush1.msra.mxu0 0.0
    %246 = vmatprep.subr.mxu0 0.0
    %247 = vmatpush1.msra.mxu0 0.0
    %248 = vmatprep.subr.mxu0 0.0
    %249 = vmatpush1.msra.mxu0 0.0
    %250 = vmatprep.subr.mxu0 0.0
    %251 = vmatpush1.msra.mxu0 0.0
    %252 = vmatprep.subr.mxu0 0.0
    %253 = vmatpush1.msra.mxu0 0.0
    %254 = vmatprep.subr.mxu0 0.0
    %255 = vmatpush1.msra.mxu0 0.0
    %256 = vmatprep.subr.mxu0 0.0
    %257 = vmatpush1.msra.mxu0 0.0
    %258 = vmatprep.subr.mxu0 0.0
    %259 = vmatpush1.msra.mxu0 0.0
    %260 = vmatprep.subr.mxu0 0.0
    %261 = vmatpush1.msra.mxu0 0.0
    %262 = vmatprep.subr.mxu0 0.0
    %263 = vmatpush1.msra.mxu0 0.0
    %264 = vmatprep.subr.mxu0 0.0
    %265 = vmatpush1.msra.mxu0 0.0
    %266 = vmatprep.subr.mxu0 0.0
    %267 = vmatpush1.msra.mxu0 0.0
    %268 = vmatprep.subr.mxu0 0.0
    %269 = vmatpush1.msra.mxu0 0.0
    %270 = vmatprep.subr.mxu0 0.0
    %271 = vmatpush1.msra.mxu0 0.0
    %272 = vmatprep.subr.mxu0 0.0
    %273 = vmatpush1.msra.mxu0 0.0
    %274 = vmatprep.subr.mxu0 0.0
    %275 = vmatpush1.msra.mxu0 0.0
    %276 = vmatprep.subr.mxu0 0.0
    %277 = vmatpush1.msra.mxu0 0.0
    %278 = vmatprep.mubr.f32.mxu0 0.0
    %279 = vmatmul.mubr.f32.gmra.mrb[0].mxu0 %v203
    %v280 = vpop.f32.mrb[0].mxu0
    %v281 = vadd.f32 %v200, %v280
    %v282 = vpop.f32.mrb[0].mxu0
    %283 = vmatprep.mubr.f32.mxu0 0.0
    %284 = vmatmul.mubr.f32.gmra.mrb[0].mxu0 %v206
    %v285 = vpop.f32.mrb[0].mxu0
    %v286 = vadd.f32 %v200, %v285
    %v287 = vpop.f32.mrb[0].mxu0
    %288 = vmatprep.mubr.f32.mxu0 0.0
    %289 = vmatmul.mubr.f32.gmra.mrb[0].mxu0 %v209
    %v290 = vpop.f32.mrb[0].mxu0
    %v291 = vadd.f32 %v200, %v290
    %v292 = vpop.f32.mrb[0].mxu0
    %293 = vmatprep.mubr.f32.mxu0 0.0
    %294 = vmatmul.mubr.f32.gmra.mrb[0].mxu0 %v212
    %v295 = vpop.f32.mrb[0].mxu0
    %v296 = vadd.f32 %v200, %v295
    %v297 = vpop.f32.mrb[0].mxu0
    %298 = vdwg.mxu0
    %vm299 = vcmp.gt.f32.partialorder %v281, 0.0
    %vm300 = vcmp.gt.f32.partialorder %v286, 0.0
    %vm301 = vcmp.gt.f32.partialorder %v291, 0.0
    %vm302 = vcmp.gt.f32.partialorder %v296, 0.0
    %v303 = vmin.f32 %v281, 0.0
    %v304 = vmin.f32 %v286, 0.0
    %v305 = vmin.f32 %v291, 0.0
    %v306 = vmin.f32 %v296, 0.0
    %v307 = vmul.f32 %v303, 1.442695
    %v308 = vpow.pop %v307
    %v309 = vmul.f32 %v304, 1.442695
    %v310 = vpow.pop %v309
    %v311 = vmul.f32 %v305, 1.442695
    %v312 = vpow.pop %v311
    %v313 = vmul.f32 %v306, 1.442695
    %v314 = vpow.pop %v313
    %v315 = vsub.f32 %v308, 1.0
    %v316 = vsub.f32 %v310, 1.0
    %v317 = vsub.f32 %v312, 1.0
    %v318 = vsub.f32 %v314, 1.0
    %v319 = vsel %vm299, %v281, %v315
    %v320 = vsel %vm300, %v286, %v316
    %v321 = vsel %vm301, %v291, %v317
    %v322 = vsel %vm302, %v296, %v318
    %s323 = scalar_lea.vmem [#allocation6], 64
    %v324 = vld [vmem:[%s323] sm:$0xff]
    %v325 = vld [vmem:[%s323 + $0x8] sm:$0xff]
    %v326 = vld [vmem:[%s323 + $0x10] sm:$0xff]
    %v327 = vld [vmem:[%s323 + $0x18] sm:$0xff]
    %s328 = scalar_lea.vmem %s4, 2
    %v329 = vld [vmem:[%s328] sm:$0x1]
    %v331 = vlaneseq
    %v332 = vshrl.u32 %v331, 7
    %v333 = vsub.s32 0, %v332
    %v334 = vrot.slane %v329, %v333
    %v337 = vsel %vm67, %v319, 0
    %v340 = vsel %vm67, %v320, 0
    %v343 = vsel %vm67, %v321, 0
    %v346 = vsel %vm67, %v322, 0
    %348 = vmatprep.subr.mxu0 0.0
    %349 = vmatpush1.msra.mxu0 %v324
    %350 = vmatprep.subr.mxu0 0.0
    %351 = vmatpush1.msra.mxu0 %v325
    %352 = vmatprep.subr.mxu0 0.0
    %353 = vmatpush1.msra.mxu0 %v326
    %354 = vmatprep.subr.mxu0 0.0
    %355 = vmatpush1.msra.mxu0 %v327
    %356 = vmatprep.subr.mxu0 0.0
    %357 = vmatpush1.msra.mxu0 0.0
    %358 = vmatprep.subr.mxu0 0.0
    %359 = vmatpush1.msra.mxu0 0.0
    %360 = vmatprep.subr.mxu0 0.0
    %361 = vmatpush1.msra.mxu0 0.0
    %362 = vmatprep.subr.mxu0 0.0
    %363 = vmatpush1.msra.mxu0 0.0
    %364 = vmatprep.subr.mxu0 0.0
    %365 = vmatpush1.msra.mxu0 0.0
    %366 = vmatprep.subr.mxu0 0.0
    %367 = vmatpush1.msra.mxu0 0.0
    %368 = vmatprep.subr.mxu0 0.0
    %369 = vmatpush1.msra.mxu0 0.0
    %370 = vmatprep.subr.mxu0 0.0
    %371 = vmatpush1.msra.mxu0 0.0
    %372 = vmatprep.subr.mxu0 0.0
    %373 = vmatpush1.msra.mxu0 0.0
    %374 = vmatprep.subr.mxu0 0.0
    %375 = vmatpush1.msra.mxu0 0.0
    %376 = vmatprep.subr.mxu0 0.0
    %377 = vmatpush1.msra.mxu0 0.0
    %378 = vmatprep.subr.mxu0 0.0
    %379 = vmatpush1.msra.mxu0 0.0
    %380 = vmatprep.subr.mxu0 0.0
    %381 = vmatpush1.msra.mxu0 0.0
    %382 = vmatprep.subr.mxu0 0.0
    %383 = vmatpush1.msra.mxu0 0.0
    %384 = vmatprep.subr.mxu0 0.0
    %385 = vmatpush1.msra.mxu0 0.0
    %386 = vmatprep.subr.mxu0 0.0
    %387 = vmatpush1.msra.mxu0 0.0
    %388 = vmatprep.subr.mxu0 0.0
    %389 = vmatpush1.msra.mxu0 0.0
    %390 = vmatprep.subr.mxu0 0.0
    %391 = vmatpush1.msra.mxu0 0.0
    %392 = vmatprep.subr.mxu0 0.0
    %393 = vmatpush1.msra.mxu0 0.0
    %394 = vmatprep.subr.mxu0 0.0
    %395 = vmatpush1.msra.mxu0 0.0
    %396 = vmatprep.subr.mxu0 0.0
    %397 = vmatpush1.msra.mxu0 0.0
    %398 = vmatprep.subr.mxu0 0.0
    %399 = vmatpush1.msra.mxu0 0.0
    %400 = vmatprep.subr.mxu0 0.0
    %401 = vmatpush1.msra.mxu0 0.0
    %402 = vmatprep.subr.mxu0 0.0
    %403 = vmatpush1.msra.mxu0 0.0
    %404 = vmatprep.subr.mxu0 0.0
    %405 = vmatpush1.msra.mxu0 0.0
    %406 = vmatprep.subr.mxu0 0.0
    %407 = vmatpush1.msra.mxu0 0.0
    %408 = vmatprep.subr.mxu0 0.0
    %409 = vmatpush1.msra.mxu0 0.0
    %410 = vmatprep.subr.mxu0 0.0
    %411 = vmatpush1.msra.mxu0 0.0
    %412 = vmatprep.mubr.f32.mxu0 0.0
    %413 = vmatmul.mubr.f32.gmra.mrb[0].mxu0 %v337
    %v414 = vpop.f32.mrb[0].mxu0
    %v415 = vadd.f32 %v334, %v414
    %v416 = vpop.f32.mrb[0].mxu0
    %417 = vmatprep.mubr.f32.mxu0 0.0
    %418 = vmatmul.mubr.f32.gmra.mrb[0].mxu0 %v340
    %v419 = vpop.f32.mrb[0].mxu0
    %v420 = vadd.f32 %v334, %v419
    %v421 = vpop.f32.mrb[0].mxu0
    %422 = vmatprep.mubr.f32.mxu0 0.0
    %423 = vmatmul.mubr.f32.gmra.mrb[0].mxu0 %v343
    %v424 = vpop.f32.mrb[0].mxu0
    %v425 = vadd.f32 %v334, %v424
    %v426 = vpop.f32.mrb[0].mxu0
    %427 = vmatprep.mubr.f32.mxu0 0.0
    %428 = vmatmul.mubr.f32.gmra.mrb[0].mxu0 %v346
    %v429 = vpop.f32.mrb[0].mxu0
    %v430 = vadd.f32 %v334, %v429
    %v431 = vpop.f32.mrb[0].mxu0
    %432 = vdwg.mxu0
    %s433 = scalar_lea.vmem [#allocation6], 96
    %v434 = vld [vmem:[%s433] sm:$0xff]
    %v435 = vld [vmem:[%s433 + $0x8] sm:$0xff]
    %v436 = vld [vmem:[%s433 + $0x10] sm:$0xff]
    %v437 = vld [vmem:[%s433 + $0x18] sm:$0xff]
    %v439 = vsel %vm67, %v415, 0
    %v442 = vsel %vm67, %v420, 0
    %v445 = vsel %vm67, %v425, 0
    %v448 = vsel %vm67, %v430, 0
    %450 = vmatprep.subr.mxu0 0.0
    %451 = vmatpush1.msra.mxu0 %v434
    %452 = vmatprep.subr.mxu0 0.0
    %453 = vmatpush1.msra.mxu0 %v435
    %454 = vmatprep.subr.mxu0 0.0
    %455 = vmatpush1.msra.mxu0 %v436
    %456 = vmatprep.subr.mxu0 0.0
    %457 = vmatpush1.msra.mxu0 %v437
    %458 = vmatprep.subr.mxu0 0.0
    %459 = vmatpush1.msra.mxu0 0.0
    %460 = vmatprep.subr.mxu0 0.0
    %461 = vmatpush1.msra.mxu0 0.0
    %462 = vmatprep.subr.mxu0 0.0
    %463 = vmatpush1.msra.mxu0 0.0
    %464 = vmatprep.subr.mxu0 0.0
    %465 = vmatpush1.msra.mxu0 0.0
    %466 = vmatprep.subr.mxu0 0.0
    %467 = vmatpush1.msra.mxu0 0.0
    %468 = vmatprep.subr.mxu0 0.0
    %469 = vmatpush1.msra.mxu0 0.0
    %470 = vmatprep.subr.mxu0 0.0
    %471 = vmatpush1.msra.mxu0 0.0
    %472 = vmatprep.subr.mxu0 0.0
    %473 = vmatpush1.msra.mxu0 0.0
    %474 = vmatprep.subr.mxu0 0.0
    %475 = vmatpush1.msra.mxu0 0.0
    %476 = vmatprep.subr.mxu0 0.0
    %477 = vmatpush1.msra.mxu0 0.0
    %478 = vmatprep.subr.mxu0 0.0
    %479 = vmatpush1.msra.mxu0 0.0
    %480 = vmatprep.subr.mxu0 0.0
    %481 = vmatpush1.msra.mxu0 0.0
    %482 = vmatprep.subr.mxu0 0.0
    %483 = vmatpush1.msra.mxu0 0.0
    %484 = vmatprep.subr.mxu0 0.0
    %485 = vmatpush1.msra.mxu0 0.0
    %486 = vmatprep.subr.mxu0 0.0
    %487 = vmatpush1.msra.mxu0 0.0
    %488 = vmatprep.subr.mxu0 0.0
    %489 = vmatpush1.msra.mxu0 0.0
    %490 = vmatprep.subr.mxu0 0.0
    %491 = vmatpush1.msra.mxu0 0.0
    %492 = vmatprep.subr.mxu0 0.0
    %493 = vmatpush1.msra.mxu0 0.0
    %494 = vmatprep.subr.mxu0 0.0
    %495 = vmatpush1.msra.mxu0 0.0
    %496 = vmatprep.subr.mxu0 0.0
    %497 = vmatpush1.msra.mxu0 0.0
    %498 = vmatprep.subr.mxu0 0.0
    %499 = vmatpush1.msra.mxu0 0.0
    %500 = vmatprep.subr.mxu0 0.0
    %501 = vmatpush1.msra.mxu0 0.0
    %502 = vmatprep.subr.mxu0 0.0
    %503 = vmatpush1.msra.mxu0 0.0
    %504 = vmatprep.subr.mxu0 0.0
    %505 = vmatpush1.msra.mxu0 0.0
    %506 = vmatprep.subr.mxu0 0.0
    %507 = vmatpush1.msra.mxu0 0.0
    %508 = vmatprep.subr.mxu0 0.0
    %509 = vmatpush1.msra.mxu0 0.0
    %510 = vmatprep.subr.mxu0 0.0
    %511 = vmatpush1.msra.mxu0 0.0
    %512 = vmatprep.subr.mxu0 0.0
    %513 = vmatpush1.msra.mxu0 0.0
    %514 = vmatprep.mubr.f32.mxu0 0.0
    %515 = vmatmul.mubr.f32.gmra.mrb[0].mxu0 %v439
    %v516 = vpop.f32.mrb[0].mxu0
    %v517 = vadd.f32 0.0, %v516
    %v518 = vpop.f32.mrb[0].mxu0
    %519 = vmatprep.mubr.f32.mxu0 0.0
    %520 = vmatmul.mubr.f32.gmra.mrb[0].mxu0 %v442
    %v521 = vpop.f32.mrb[0].mxu0
    %v522 = vadd.f32 0.0, %v521
    %v523 = vpop.f32.mrb[0].mxu0
    %524 = vmatprep.mubr.f32.mxu0 0.0
    %525 = vmatmul.mubr.f32.gmra.mrb[0].mxu0 %v445
    %v526 = vpop.f32.mrb[0].mxu0
    %v527 = vadd.f32 0.0, %v526
    %v528 = vpop.f32.mrb[0].mxu0
    %529 = vmatprep.mubr.f32.mxu0 0.0
    %530 = vmatmul.mubr.f32.gmra.mrb[0].mxu0 %v448
    %v531 = vpop.f32.mrb[0].mxu0
    %v532 = vadd.f32 0.0, %v531
    %v533 = vpop.f32.mrb[0].mxu0
    %534 = vdwg.mxu0
    %v535 = vld [vmem:[#allocation2] sm:$0xff]
    %v536 = vld [vmem:[#allocation2 + $0x8] sm:$0xff]
    %v537 = vld [vmem:[#allocation2 + $0x10] sm:$0xff]
    %v538 = vld [vmem:[#allocation2 + $0x18] sm:$0xff]
    %s539 = scalar_lea.vmem %s4, 3
    %v540 = vld [vmem:[%s539] sm:$0x1]
    %v542 = vlaneseq
    %v543 = vshrl.u32 %v542, 7
    %v544 = vsub.s32 0, %v543
    %v545 = vrot.slane %v540, %v544
    %v548 = vsel %vm67, %v535, 0
    %v551 = vsel %vm67, %v536, 0
    %v554 = vsel %vm67, %v537, 0
    %v557 = vsel %vm67, %v538, 0
    %559 = vmatprep.subr.mxu0 0.0
    %560 = vmatpush1.msra.mxu0 %v517
    %561 = vmatprep.subr.mxu0 0.0
    %562 = vmatpush1.msra.mxu0 %v522
    %563 = vmatprep.subr.mxu0 0.0
    %564 = vmatpush1.msra.mxu0 %v527
    %565 = vmatprep.subr.mxu0 0.0
    %566 = vmatpush1.msra.mxu0 %v532
    %567 = vmatprep.subr.mxu0 0.0
    %568 = vmatpush1.msra.mxu0 0.0
    %569 = vmatprep.subr.mxu0 0.0
    %570 = vmatpush1.msra.mxu0 0.0
    %571 = vmatprep.subr.mxu0 0.0
    %572 = vmatpush1.msra.mxu0 0.0
    %573 = vmatprep.subr.mxu0 0.0
    %574 = vmatpush1.msra.mxu0 0.0
    %575 = vmatprep.subr.mxu0 0.0
    %576 = vmatpush1.msra.mxu0 0.0
    %577 = vmatprep.subr.mxu0 0.0
    %578 = vmatpush1.msra.mxu0 0.0
    %579 = vmatprep.subr.mxu0 0.0
    %580 = vmatpush1.msra.mxu0 0.0
    %581 = vmatprep.subr.mxu0 0.0
    %582 = vmatpush1.msra.mxu0 0.0
    %583 = vmatprep.subr.mxu0 0.0
    %584 = vmatpush1.msra.mxu0 0.0
    %585 = vmatprep.subr.mxu0 0.0
    %586 = vmatpush1.msra.mxu0 0.0
    %587 = vmatprep.subr.mxu0 0.0
    %588 = vmatpush1.msra.mxu0 0.0
    %589 = vmatprep.subr.mxu0 0.0
    %590 = vmatpush1.msra.mxu0 0.0
    %591 = vmatprep.subr.mxu0 0.0
    %592 = vmatpush1.msra.mxu0 0.0
    %593 = vmatprep.subr.mxu0 0.0
    %594 = vmatpush1.msra.mxu0 0.0
    %595 = vmatprep.subr.mxu0 0.0
    %596 = vmatpush1.msra.mxu0 0.0
    %597 = vmatprep.subr.mxu0 0.0
    %598 = vmatpush1.msra.mxu0 0.0
    %599 = vmatprep.subr.mxu0 0.0
    %600 = vmatpush1.msra.mxu0 0.0
    %601 = vmatprep.subr.mxu0 0.0
    %602 = vmatpush1.msra.mxu0 0.0
    %603 = vmatprep.subr.mxu0 0.0
    %604 = vmatpush1.msra.mxu0 0.0
    %605 = vmatprep.subr.mxu0 0.0
    %606 = vmatpush1.msra.mxu0 0.0
    %607 = vmatprep.subr.mxu0 0.0
    %608 = vmatpush1.msra.mxu0 0.0
    %609 = vmatprep.subr.mxu0 0.0
    %610 = vmatpush1.msra.mxu0 0.0
    %611 = vmatprep.subr.mxu0 0.0
    %612 = vmatpush1.msra.mxu0 0.0
    %613 = vmatprep.subr.mxu0 0.0
    %614 = vmatpush1.msra.mxu0 0.0
    %615 = vmatprep.subr.mxu0 0.0
    %616 = vmatpush1.msra.mxu0 0.0
    %617 = vmatprep.subr.mxu0 0.0
    %618 = vmatpush1.msra.mxu0 0.0
    %619 = vmatprep.subr.mxu0 0.0
    %620 = vmatpush1.msra.mxu0 0.0
    %621 = vmatprep.subr.mxu0 0.0
    %622 = vmatpush1.msra.mxu0 0.0
    %623 = vmatprep.mubr.f32.mxu0 0.0
    %624 = vmatmul.mubr.f32.gmra.mrb[0].mxu0 %v548
    %v625 = vpop.f32.mrb[0].mxu0
    %v626 = vadd.f32 %v545, %v625
    %v627 = vpop.f32.mrb[0].mxu0
    %628 = vmatprep.mubr.f32.mxu0 0.0
    %629 = vmatmul.mubr.f32.gmra.mrb[0].mxu0 %v551
    %v630 = vpop.f32.mrb[0].mxu0
    %v631 = vadd.f32 %v545, %v630
    %v632 = vpop.f32.mrb[0].mxu0
    %633 = vmatprep.mubr.f32.mxu0 0.0
    %634 = vmatmul.mubr.f32.gmra.mrb[0].mxu0 %v554
    %v635 = vpop.f32.mrb[0].mxu0
    %v636 = vadd.f32 %v545, %v635
    %v637 = vpop.f32.mrb[0].mxu0
    %638 = vmatprep.mubr.f32.mxu0 0.0
    %639 = vmatmul.mubr.f32.gmra.mrb[0].mxu0 %v557
    %v640 = vpop.f32.mrb[0].mxu0
    %v641 = vadd.f32 %v545, %v640
    %v642 = vpop.f32.mrb[0].mxu0
    %643 = vdwg.mxu0
    %644 = vst.msk [vmem:[#allocation8] sm:$0xff] %vm67, %v626
    %645 = vst.msk [vmem:[#allocation8 + $0x8] sm:$0xff] %vm67, %v631
    %646 = vst.msk [vmem:[#allocation8 + $0x10] sm:$0xff] %vm67, %v636
    %647 = vst.msk [vmem:[#allocation8 + $0x18] sm:$0xff] %vm67, %v641
    %v648 = vlaneseq
    %v649 = vand.u32 %v648, 127
    %v650 = vld [vmem:[%s0] sm:$0xff]
    %v651 = vld [vmem:[%s0 + $0x8] sm:$0xff]
    %652 = vset.pattern.permute.xlu0 0
    %653 = vperm.xlu0 %652, %v650
    %v654 = vpop.permute.xlu0 %653
    %655 = vset.pattern.permute.xlu0 0
    %656 = vperm.xlu0 %655, %v651
    %v657 = vpop.permute.xlu0 %656
    %vm658 = vcmp.eq.s32.totalorder %v649, %v654
    %vm659 = vcmp.eq.s32.totalorder %v649, %v657
    %v660 = vsel %vm658, 1, 0
    %v661 = vsel %vm659, 1, 0
    %v662 = vcvt.s32.f32 %v660
    %v663 = vcvt.s32.f32 %v661
    %v665 = vsel %vm67, %v662, 0
    %v668 = vsel %vm67, %v663, 0
    %670 = vmatprep.subr.mxu0 0.0
    %671 = vmatpush1.msra.mxu0 %v626
    %672 = vmatprep.subr.mxu0 0.0
    %673 = vmatpush1.msra.mxu0 %v631
    %674 = vmatprep.subr.mxu0 0.0
    %675 = vmatpush1.msra.mxu0 %v636
    %676 = vmatprep.subr.mxu0 0.0
    %677 = vmatpush1.msra.mxu0 %v641
    %678 = vmatprep.subr.mxu0 0.0
    %679 = vmatpush1.msra.mxu0 0.0
    %680 = vmatprep.subr.mxu0 0.0
    %681 = vmatpush1.msra.mxu0 0.0
    %682 = vmatprep.subr.mxu0 0.0
    %683 = vmatpush1.msra.mxu0 0.0
    %684 = vmatprep.subr.mxu0 0.0
    %685 = vmatpush1.msra.mxu0 0.0
    %686 = vmatprep.subr.mxu0 0.0
    %687 = vmatpush1.msra.mxu0 0.0
    %688 = vmatprep.subr.mxu0 0.0
    %689 = vmatpush1.msra.mxu0 0.0
    %690 = vmatprep.subr.mxu0 0.0
    %691 = vmatpush1.msra.mxu0 0.0
    %692 = vmatprep.subr.mxu0 0.0
    %693 = vmatpush1.msra.mxu0 0.0
    %694 = vmatprep.subr.mxu0 0.0
    %695 = vmatpush1.msra.mxu0 0.0
    %696 = vmatprep.subr.mxu0 0.0
    %697 = vmatpush1.msra.mxu0 0.0
    %698 = vmatprep.subr.mxu0 0.0
    %699 = vmatpush1.msra.mxu0 0.0
    %700 = vmatprep.subr.mxu0 0.0
    %701 = vmatpush1.msra.mxu0 0.0
    %702 = vmatprep.subr.mxu0 0.0
    %703 = vmatpush1.msra.mxu0 0.0
    %704 = vmatprep.subr.mxu0 0.0
    %705 = vmatpush1.msra.mxu0 0.0
    %706 = vmatprep.subr.mxu0 0.0
    %707 = vmatpush1.msra.mxu0 0.0
    %708 = vmatprep.subr.mxu0 0.0
    %709 = vmatpush1.msra.mxu0 0.0
    %710 = vmatprep.subr.mxu0 0.0
    %711 = vmatpush1.msra.mxu0 0.0
    %712 = vmatprep.subr.mxu0 0.0
    %713 = vmatpush1.msra.mxu0 0.0
    %714 = vmatprep.subr.mxu0 0.0
    %715 = vmatpush1.msra.mxu0 0.0
    %716 = vmatprep.subr.mxu0 0.0
    %717 = vmatpush1.msra.mxu0 0.0
    %718 = vmatprep.subr.mxu0 0.0
    %719 = vmatpush1.msra.mxu0 0.0
    %720 = vmatprep.subr.mxu0 0.0
    %721 = vmatpush1.msra.mxu0 0.0
    %722 = vmatprep.subr.mxu0 0.0
    %723 = vmatpush1.msra.mxu0 0.0
    %724 = vmatprep.subr.mxu0 0.0
    %725 = vmatpush1.msra.mxu0 0.0
    %726 = vmatprep.subr.mxu0 0.0
    %727 = vmatpush1.msra.mxu0 0.0
    %728 = vmatprep.subr.mxu0 0.0
    %729 = vmatpush1.msra.mxu0 0.0
    %730 = vmatprep.subr.mxu0 0.0
    %731 = vmatpush1.msra.mxu0 0.0
    %732 = vmatprep.subr.mxu0 0.0
    %733 = vmatpush1.msra.mxu0 0.0
    %734 = vmatprep.mubr.f32.mxu0 0.0
    %735 = vmatmul.mubr.f32.gmra.mrb[0].mxu0 %v665
    %v736 = vpop.f32.mrb[0].mxu0
    %v737 = vadd.f32 0.0, %v736
    %v738 = vpop.f32.mrb[0].mxu0
    %739 = vmatprep.mubr.f32.mxu0 0.0
    %740 = vmatmul.mubr.f32.gmra.mrb[0].mxu0 %v668
    %v741 = vpop.f32.mrb[0].mxu0
    %v742 = vadd.f32 0.0, %v741
    %v743 = vpop.f32.mrb[0].mxu0
    %744 = vdwg.mxu0
    %v745 = vmul.f32 %v737, %v737
    %v746 = vmul.f32 %v742, %v742
    %v747 = vsel %vm67, %v745, 0.0
    %748 = vadd.xlane.f32.xlu0 %v747
    %v749 = vpop.xlane.xlu0 %748
    %v750 = vsel %vm67, %v746, 0.0
    %751 = vadd.xlane.f32.xlu0 %v750
    %v752 = vpop.xlane.xlu0 %751
    %v753 = vmax.f32 %v749, 1e-24
    %v754 = vmax.f32 %v752, 1e-24
    %v755 = vrsqrt.pop %v753
    %v756 = vrsqrt.pop %v754
    %v757 = vmul.f32 %v737, %v755
    %v758 = vmul.f32 %v742, %v756
    %v759 = vsub.f32 %v757, %v758
    %v760 = vmul.f32 %v759, %v759
    %v761 = vsel %vm67, %v760, 0.0
    %762 = vadd.xlane.f32.xlu0 %v761
    %v763 = vpop.xlane.xlu0 %762
    %v764 = vrot.slane %v763, 4
    %v765 = vadd.f32 %v763, %v764
    %v766 = vrot.slane %v765, 2
    %v767 = vadd.f32 %v765, %v766
    %v768 = vrot.slane %v767, 1
    %v769 = vadd.f32 %v767, %v768
    %s770 = vtos %v769
    %s771 = smul.f32 %s770, 0.125
    %s772 = scalar_lea.smem [#allocation9], 0
    %773 = sst [smem:[%s772]] %s771
    // Predicated region
    $region30: #{task1_forward.1} parent=1 // pred_check
      _
    $region31: #{task1_forward.1} parent=1 // pred_check_branch
      %775 = sbr.rel (0) target = $region33
    $region32: #{task1_forward.1} parent=1 // pred_region
      %s777 = ssub.s32 512, 512
      %778 = vsyncadd [#allocation4], %s777
      %s779 = sshll.u32 [#allocation8], 4
      %s780 = int_to_ptr.vmem [resolvable:$true] %s779
      %785 = dma.vmem_to_hbm [thread:$0]  %s780, 512, %s5, [#allocation4], 128, 128, 8
    $region33: #{task1_forward.1} parent=1 // pred_fallthru
      _
    // Predicated region
    $region34: #{task1_forward.1} parent=1 // pred_check
      _
    $region35: #{task1_forward.1} parent=1 // pred_check_branch
      %787 = sbr.rel (0) target = $region37
    $region36: #{task1_forward.1} parent=1 // pred_region
      %s789 = ssub.s32 16, 16
      %790 = vsyncadd [#allocation5], %s789
      %793 = dma.smem_to_hbm [#allocation9], 16, %s6, [#allocation5]
    $region37: #{task1_forward.1} parent=1 // pred_fallthru
      _
    // Predicated region
    $region38: #{task1_forward.1} parent=1 // pred_check
      _
    $region39: #{task1_forward.1} parent=1 // pred_check_branch
      %795 = sbr.rel (0) target = $region41
    $region40: #{task1_forward.1} parent=1 // pred_region
      %796 = dma.done [#allocation4], 512
    $region41: #{task1_forward.1} parent=1 // pred_fallthru
      _
    // Predicated region
    $region42: #{task1_forward.1} parent=1 // pred_check
      _
    $region43: #{task1_forward.1} parent=1 // pred_check_branch
      %798 = sbr.rel (0) target = $region45
    $region44: #{task1_forward.1} parent=1 // pred_region
      %799 = dma.done [#allocation5], 16
    $region45: #{task1_forward.1} parent=1 // pred_fallthru
      _
    %800 = sfence
    %801 = vsyncpa [#allocation3], 1
    %802 = vsyncpa [#allocation7], 1
    %803 = vsyncpa [#allocation4], 1
    %804 = vsyncpa [#allocation5], 1

</llo_original>
